<compile_context>
chip_gen: v5e
topology: v5e:2x2
jax: 0.10.0
libtpu: 0.0.40
codegen_flags: <defaults>
</compile_context>

<pallas_src>
import jax
import jax.numpy as jnp
from jax.experimental import pallas as pl
from jax.experimental.pallas import tpu as pltpu


def model_closure_kernel(xT_ref, w1fT_ref, b1e_ref, w2T_ref, b2T_ref,
                         w3T_ref, b3T_ref, outT_ref):
    d_fix, _ = xT_ref.shape

    xT = xT_ref[...]                                   # (d_fix, TILE_N)

    # Layer 1: contraction dim is tiny (d_fix) -> VPU broadcast-FMA, no MXU.
    # h = W1f^T @ xT + b1_eff, built as sum of rank-1 broadcast products.
    h = b1e_ref[...] + w1fT_ref[:, 0:1] * xT[0:1, :]   # (H, TILE_N)
    for d in range(1, d_fix):                          # static unroll (d_fix small)
        h = h + w1fT_ref[:, d:d + 1] * xT[d:d + 1, :]
    h = jnp.tanh(h)

    # Layer 2: (H, H) @ (H, TILE_N) on the MXU, lane-dense result.
    h = jnp.tanh(
        jnp.dot(w2T_ref[...], h, preferred_element_type=jnp.float32)
        + b2T_ref[...])

    # Layer 3 (output): (d_out, H) @ (H, TILE_N) -> lane-dense store.
    outT_ref[...] = (
        jnp.dot(w3T_ref[...], h, preferred_element_type=jnp.float32)
        + b3T_ref[...]).astype(outT_ref.dtype)


def _choose_tile_n(n, max_tile_n):
    """Pick the lane-tile size.

    Large tiles amortize the ~0.35 us per-grid-step overhead; but prefer at
    least 2 grid steps (when N allows) so dimension_semantics=("parallel",)
    can shard work across v7x's two TensorCores.
    """
    n128 = pl.cdiv(n, 128) * 128
    half = n128 // 2
    if half >= 128 and half % 128 == 0:
        return min(max_tile_n, half)
    return min(max_tile_n, n128)


def model_closure_forward(fixed_inputs, parameters, weights, *, max_tile_n=2048):
    """fixed_inputs: (N, d_fix); parameters: (1, P); weights: dict of MLP params.

    Weights use (in_features, out_features) layout (transpose of nn.Linear).
    Returns (N, d_out) float32, matching the module's forward().
    """
    n, d_fix = fixed_inputs.shape
    w1, b1 = weights["w1"], weights["b1"]          # (d_fix+P, H), (1, H)
    w2, b2 = weights["w2"], weights["b2"]          # (H, H),       (1, H)
    w3, b3 = weights["w3"], weights["b3"]          # (H, d_out),   (1, d_out)
    h_dim = w1.shape[1]
    d_out = w3.shape[1]
    f32 = jnp.float32

    # Fold the loop-invariant parameter branch into the first-layer bias:
    #   concat(x, p) @ W1 + b1 == x @ W1[:d_fix] + (p @ W1[d_fix:] + b1)
    b1_eff = b1.astype(f32) + parameters.astype(f32) @ w1[d_fix:, :].astype(f32)

    # Transposed (rows -> lanes) operands.
    xT = fixed_inputs.astype(f32).T                # (d_fix, N)
    w1fT = w1[:d_fix, :].astype(f32).T             # (H, d_fix)
    b1eT = b1_eff.T                                # (H, 1)
    w2T = w2.astype(f32).T                         # (H, H)
    b2T = b2.astype(f32).T                         # (H, 1)
    w3T = w3.astype(f32).T                         # (d_out, H)
    b3T = b3.astype(f32).T                         # (d_out, 1)

    tile_n = _choose_tile_n(n, max_tile_n)
    n_pad = pl.cdiv(n, tile_n) * tile_n
    if n_pad != n:
        xT = jnp.pad(xT, ((0, 0), (0, n_pad - n)))
    grid = (n_pad // tile_n,)

    outT = pl.pallas_call(
        model_closure_kernel,
        out_shape=jax.ShapeDtypeStruct((d_out, n_pad), f32),
        grid_spec=pltpu.PrefetchScalarGridSpec(
            num_scalar_prefetch=0,
            grid=grid,
            in_specs=[
                pl.BlockSpec((d_fix, tile_n), lambda i: (0, i)),   # xT tile (lanes = rows)
                pl.BlockSpec((h_dim, d_fix),  lambda i: (0, 0)),   # W1f^T (resident)
                pl.BlockSpec((h_dim, 1),      lambda i: (0, 0)),   # b1_eff^T (resident)
                pl.BlockSpec((h_dim, h_dim),  lambda i: (0, 0)),   # W2^T
                pl.BlockSpec((h_dim, 1),      lambda i: (0, 0)),   # b2^T
                pl.BlockSpec((d_out, h_dim),  lambda i: (0, 0)),   # W3^T
                pl.BlockSpec((d_out, 1),      lambda i: (0, 0)),   # b3^T
            ],
            out_specs=pl.BlockSpec((d_out, tile_n), lambda i: (0, i)),
        ),
        compiler_params=pltpu.CompilerParams(
            dimension_semantics=("parallel",)),
    )(xT, w1fT, b1eT, w2T, b2T, w3T, b3T)

    # Back to the module's (num_data_points, d_out) row-major layout.
    return outT[:, :n].T


def _reference_forward(fixed_inputs, parameters, weights):
    n = fixed_inputs.shape[0]
    model_inputs = jnp.concatenate(
        [fixed_inputs, jnp.tile(parameters, (n, 1))], axis=1)
    h = jnp.tanh(model_inputs @ weights["w1"] + weights["b1"])
    h = jnp.tanh(h @ weights["w2"] + weights["b2"])
    return h @ weights["w3"] + weights["b3"]


if __name__ == "__main__":
    # Small shapes consistent with the module:
    #   num_data_points = 256, fixed input dim = 2 (coordinates),
    #   num calibration parameters = 2, MLP: 4 -> 32 -> 32 -> 2.
    N, D_FIX, P, H, D_OUT = 256, 2, 2, 32, 2

    key = jax.random.PRNGKey(0)
    k_fix, k_par, k1, k2, k3 = jax.random.split(key, 5)

    fixed_inputs = jax.random.normal(k_fix, (N, D_FIX), dtype=jnp.float32)
    initial_parameters = jax.random.normal(k_par, (1, P), dtype=jnp.float32)

    weights = {
        "w1": jax.random.normal(k1, (D_FIX + P, H), dtype=jnp.float32) * 0.5,
        "b1": jnp.zeros((1, H), dtype=jnp.float32),
        "w2": jax.random.normal(k2, (H, H), dtype=jnp.float32) * 0.2,
        "b2": jnp.zeros((1, H), dtype=jnp.float32),
        "w3": jax.random.normal(k3, (H, D_OUT), dtype=jnp.float32) * 0.2,
        "b3": jnp.zeros((1, D_OUT), dtype=jnp.float32),
    }

    out = model_closure_forward(fixed_inputs, initial_parameters, weights)
    out = jax.block_until_ready(out)
    ref = _reference_forward(fixed_inputs, initial_parameters, weights)
    assert out.shape == (N, D_OUT)
    assert jnp.allclose(out, ref, atol=1e-4, rtol=1e-4)

    # Also exercise the N-not-a-multiple-of-the-tile padding path.
    N2 = 200
    out2 = model_closure_forward(fixed_inputs[:N2], initial_parameters, weights)
    out2 = jax.block_until_ready(out2)
    ref2 = _reference_forward(fixed_inputs[:N2], initial_parameters, weights)
    assert out2.shape == (N2, D_OUT)
    assert jnp.allclose(out2, ref2, atol=1e-4, rtol=1e-4)

    print("KERNEL_OK")
</pallas_src>

<mosaic_0001>
module attributes {stable_mosaic.version = 11 : i64} {
  func.func @model_closure_kernel(%arg0: i32, %arg1: memref<2x128xf32, #tpu.memory_space<vmem>>, %arg2: memref<32x2xf32, #tpu.memory_space<vmem>>, %arg3: memref<32x1xf32, #tpu.memory_space<vmem>>, %arg4: memref<32x32xf32, #tpu.memory_space<vmem>>, %arg5: memref<32x1xf32, #tpu.memory_space<vmem>>, %arg6: memref<2x32xf32, #tpu.memory_space<vmem>>, %arg7: memref<2x1xf32, #tpu.memory_space<vmem>>, %arg8: memref<2x128xf32, #tpu.memory_space<vmem>>) attributes {dimension_semantics = [#tpu.dimension_semantics<parallel>], iteration_bounds = array<i64: 2>, scalar_prefetch = 0 : i64, scratch_operands = 0 : i64, tpu.core_type = #tpu.core_type<tc>, window_params = [{transform_indices = @transform_0, window_bounds = array<i64: 2, 128>}, {pipeline_mode = #tpu.pipeline_mode<synchronous>, transform_indices = @transform_1, window_bounds = array<i64: 32, 2>}, {pipeline_mode = #tpu.pipeline_mode<synchronous>, transform_indices = @transform_2, window_bounds = array<i64: 32, 1>}, {pipeline_mode = #tpu.pipeline_mode<synchronous>, transform_indices = @transform_3, window_bounds = array<i64: 32, 32>}, {pipeline_mode = #tpu.pipeline_mode<synchronous>, transform_indices = @transform_4, window_bounds = array<i64: 32, 1>}, {pipeline_mode = #tpu.pipeline_mode<synchronous>, transform_indices = @transform_5, window_bounds = array<i64: 2, 32>}, {pipeline_mode = #tpu.pipeline_mode<synchronous>, transform_indices = @transform_6, window_bounds = array<i64: 2, 1>}, {transform_indices = @transform_7, window_bounds = array<i64: 2, 128>}]} {
    %c0 = arith.constant 0 : index
    %c0_0 = arith.constant 0 : index
    %0 = vector.load %arg1[%c0, %c0_0] : memref<2x128xf32, #tpu.memory_space<vmem>>, vector<2x128xf32>
    %c0_1 = arith.constant 0 : index
    %c0_2 = arith.constant 0 : index
    %1 = vector.load %arg3[%c0_1, %c0_2] : memref<32x1xf32, #tpu.memory_space<vmem>>, vector<32x1xf32>
    %c0_3 = arith.constant 0 : index
    %c0_4 = arith.constant 0 : index
    %2 = vector.load %arg2[%c0_3, %c0_4] : memref<32x2xf32, #tpu.memory_space<vmem>>, vector<32x1xf32>
    %3 = vector.extract_strided_slice %0 {offsets = [0, 0], sizes = [1, 128], strides = [1, 1]} : vector<2x128xf32> to vector<1x128xf32>
    %4 = vector.broadcast %2 : vector<32x1xf32> to vector<32x128xf32>
    %5 = vector.broadcast %3 : vector<1x128xf32> to vector<32x128xf32>
    %6 = arith.mulf %4, %5 : vector<32x128xf32>
    %7 = vector.broadcast %1 : vector<32x1xf32> to vector<32x128xf32>
    %8 = arith.addf %7, %6 : vector<32x128xf32>
    %c0_5 = arith.constant 0 : index
    %c1 = arith.constant 1 : index
    %9 = vector.load %arg2[%c0_5, %c1] : memref<32x2xf32, #tpu.memory_space<vmem>>, vector<32x1xf32>
    %10 = vector.extract_strided_slice %0 {offsets = [1, 0], sizes = [1, 128], strides = [1, 1]} : vector<2x128xf32> to vector<1x128xf32>
    %11 = vector.broadcast %9 : vector<32x1xf32> to vector<32x128xf32>
    %12 = vector.broadcast %10 : vector<1x128xf32> to vector<32x128xf32>
    %13 = arith.mulf %11, %12 : vector<32x128xf32>
    %14 = arith.addf %8, %13 : vector<32x128xf32>
    %15 = math.tanh %14 : vector<32x128xf32>
    %c0_6 = arith.constant 0 : index
    %c0_7 = arith.constant 0 : index
    %16 = vector.load %arg4[%c0_6, %c0_7] : memref<32x32xf32, #tpu.memory_space<vmem>>, vector<32x32xf32>
    %cst = arith.constant dense<0.000000e+00> : vector<32x128xf32>
    %17 = tpu.matmul %16, %15, %cst {dimension_numbers = #tpu.dot_dimension_numbers<[1], [0], [0], [1], [0, 0, 1, 1], [], []>} : vector<32x32xf32>, vector<32x128xf32>, vector<32x128xf32> -> vector<32x128xf32>
    %c0_8 = arith.constant 0 : index
    %c0_9 = arith.constant 0 : index
    %18 = vector.load %arg5[%c0_8, %c0_9] : memref<32x1xf32, #tpu.memory_space<vmem>>, vector<32x1xf32>
    %19 = vector.broadcast %18 : vector<32x1xf32> to vector<32x128xf32>
    %20 = arith.addf %17, %19 : vector<32x128xf32>
    %21 = math.tanh %20 : vector<32x128xf32>
    %c0_10 = arith.constant 0 : index
    %c0_11 = arith.constant 0 : index
    %22 = vector.load %arg6[%c0_10, %c0_11] : memref<2x32xf32, #tpu.memory_space<vmem>>, vector<2x32xf32>
    %cst_12 = arith.constant dense<0.000000e+00> : vector<2x128xf32>
    %23 = tpu.matmul %22, %21, %cst_12 {dimension_numbers = #tpu.dot_dimension_numbers<[1], [0], [0], [1], [0, 0, 1, 1], [], []>} : vector<2x32xf32>, vector<32x128xf32>, vector<2x128xf32> -> vector<2x128xf32>
    %c0_13 = arith.constant 0 : index
    %c0_14 = arith.constant 0 : index
    %24 = vector.load %arg7[%c0_13, %c0_14] : memref<2x1xf32, #tpu.memory_space<vmem>>, vector<2x1xf32>
    %25 = vector.broadcast %24 : vector<2x1xf32> to vector<2x128xf32>
    %26 = arith.addf %23, %25 : vector<2x128xf32>
    %c0_15 = arith.constant 0 : index
    %c0_16 = arith.constant 0 : index
    %27 = vector.load %arg8[%c0_15, %c0_16] : memref<2x128xf32, #tpu.memory_space<vmem>>, vector<2x128xf32>
    tpu.vector_store %arg8[%c0_15, %c0_16], %26 {strides = array<i32>} : memref<2x128xf32, #tpu.memory_space<vmem>>, vector<2x128xf32>,
    return
  }
  func.func @transform_0(%arg0: i32) -> (i32, i32) {
    %c0_i32 = arith.constant 0 : i32
    %c0_i32_0 = arith.constant 0 : i32
    return %c0_i32, %arg0 : i32, i32
  }
  func.func @transform_1(%arg0: i32) -> (i32, i32) {
    %c0_i32 = arith.constant 0 : i32
    %c0_i32_0 = arith.constant 0 : i32
    %c0_i32_1 = arith.constant 0 : i32
    return %c0_i32, %c0_i32_0 : i32, i32
  }
  func.func @transform_2(%arg0: i32) -> (i32, i32) {
    %c0_i32 = arith.constant 0 : i32
    %c0_i32_0 = arith.constant 0 : i32
    %c0_i32_1 = arith.constant 0 : i32
    return %c0_i32, %c0_i32_0 : i32, i32
  }
  func.func @transform_3(%arg0: i32) -> (i32, i32) {
    %c0_i32 = arith.constant 0 : i32
    %c0_i32_0 = arith.constant 0 : i32
    %c0_i32_1 = arith.constant 0 : i32
    return %c0_i32, %c0_i32_0 : i32, i32
  }
  func.func @transform_4(%arg0: i32) -> (i32, i32) {
    %c0_i32 = arith.constant 0 : i32
    %c0_i32_0 = arith.constant 0 : i32
    %c0_i32_1 = arith.constant 0 : i32
    return %c0_i32, %c0_i32_0 : i32, i32
  }
  func.func @transform_5(%arg0: i32) -> (i32, i32) {
    %c0_i32 = arith.constant 0 : i32
    %c0_i32_0 = arith.constant 0 : i32
    %c0_i32_1 = arith.constant 0 : i32
    return %c0_i32, %c0_i32_0 : i32, i32
  }
  func.func @transform_6(%arg0: i32) -> (i32, i32) {
    %c0_i32 = arith.constant 0 : i32
    %c0_i32_0 = arith.constant 0 : i32
    %c0_i32_1 = arith.constant 0 : i32
    return %c0_i32, %c0_i32_0 : i32, i32
  }
  func.func @transform_7(%arg0: i32) -> (i32, i32) {
    %c0_i32 = arith.constant 0 : i32
    %c0_i32_0 = arith.constant 0 : i32
    return %c0_i32, %arg0 : i32, i32
  }
}

</mosaic_0001>

<llo_original>
// kernel: tpu_custom_call.1
$region0: #{tpu_custom_call.1}
  #allocation0 [shape = 'u32[]', space=smem, size = 0x4, offset = 0x4, fixed_abs, tag = 'smem constant byte address 0x4 - core index']
  #allocation1 [shape = 'u32[72,128]{1,0:T(1,128)}', space=vmem, size = 0x9000, scoped, tag = 'internal scratch']
  %s0 = inlined_call_operand.vmem [shape: f32[2,256], index: 0, kind: input, shape index: {}]
  %s1 = inlined_call_operand.vmem [shape: f32[32,2], index: 1, kind: input, shape index: {}]
  %s2 = inlined_call_operand.vmem [shape: f32[32,1], index: 2, kind: input, shape index: {}]
  %s3 = inlined_call_operand.vmem [shape: f32[32,32], index: 3, kind: input, shape index: {}]
  %s4 = inlined_call_operand.vmem [shape: f32[32,1], index: 4, kind: input, shape index: {}]
  %s5 = inlined_call_operand.vmem [shape: f32[2,32], index: 5, kind: input, shape index: {}]
  %s6 = inlined_call_operand.vmem [shape: f32[2,1], index: 6, kind: input, shape index: {}]
  %s7 = inlined_call_operand.hbm [shape: f32[2,256], index: 7, kind: output, shape index: {}]
  %s8 = sld [smem:[#allocation0]]
  $region61: #{tpu_custom_call.1} parent=0
    _
  %s10 = ssub.s32 1, %s8
  %s11 = scalar_select 0, %s10, %s8
  $region1: #{tpu_custom_call.1} parent=0
    #allocation2 [shape = 'u8[2048]{0}', space=vmem, size = 0x800, scoped, tag = 'output window, operand 0']
    #allocation3 [shape = 's32[2]{0}', space=sflag, size = 0x8, scoped, tag = 'scoped memory for tpu_custom_call.1']
    %12 = vsyncpa [#allocation3], 0
    %s13 = scalar_lea.sflag [#allocation3], 1
    %14 = vsyncpa %s13, 0
    loop: start=0, step=1, limit=4
    $region2: #{tpu_custom_call.1} parent=1 // loop_pre_header
      _
    $region3: #{tpu_custom_call.1} parent=1 // loop_header
      %s16 = sphi 0, %s20
      %p17 = scmp.ge.s32.totalorder %s16, 4
      %s26 = sphi 0, %s28
      %s29 = sphi 0, %s26
      %s30 = sphi 0, %s29
      %s46 = sphi 0, %s30
      %s50 = sphi 0, %s50
      %s52 = sphi 0, %s50
      %s53 = sphi 0, %s52
      %s67 = sphi 0, %s53
      %s71 = sphi 0, %s71
      %s73 = sphi 0, %s71
      %s74 = sphi 0, %s73
      %s88 = sphi 0, %s74
      %s92 = sphi 0, %s92
      %s94 = sphi 0, %s92
      %s95 = sphi 0, %s94
      %s109 = sphi 0, %s95
      %s113 = sphi 0, %s113
      %s115 = sphi 0, %s113
      %s116 = sphi 0, %s115
      %s130 = sphi 0, %s116
      %s134 = sphi 0, %s134
      %s136 = sphi 0, %s134
      %s137 = sphi 0, %s136
      %s151 = sphi 0, %s137
      %s155 = sphi 0, %s155
      %s157 = sphi 0, %s155
      %s158 = sphi 0, %s157
      %s172 = sphi 0, %s158
      %s178 = sphi 0, %s180
      %s181 = sphi 0, %s178
      %s182 = sphi 0, %s181
      %s198 = sphi 0, %s182
    $region4: #{tpu_custom_call.1} parent=1 // loop_header_branch
      %19 = sbr.rel (%p17) target = $region8
    $region5: #{tpu_custom_call.1} parent=1 // loop_body
      %s21 = ssub.s32 %s16, 1
      %s22 = ssub.s32 %s16, 2
      %s23 = sadd.s32 %s16, 1
      %s24 = ssub.s32 %s16, %s23
      %p25 = scmp.eq.s32.totalorder %s24, 0
      %s27 = sadd.s32 %s26, 1
      %s28 = scalar_select %p25, %s26, %s27
      %p31 = pneg %p25
      %p32 = scmp.eq.s32.totalorder %s16, 1
      %p33 = por %p31, %p32
      %p34 = scmp.ne.s32.totalorder %s26, %s29
      %p35 = scmp.eq.s32.totalorder %s16, 0
      %p36 = por %p34, %p35
      %p37 = scmp.ne.s32.totalorder %s26, %s29
      %p38 = scmp.eq.s32.totalorder %s21, 1
      %p39 = por %p37, %p38
      %p40 = scmp.ne.s32.totalorder %s29, %s30
      %p41 = scmp.eq.s32.totalorder %s21, 0
      %p42 = por %p40, %p41
      %p43 = scmp.ne.s32.totalorder %s29, %s30
      %p44 = scmp.eq.s32.totalorder %s22, 1
      %p45 = por %p43, %p44
      %p47 = scmp.ne.s32.totalorder %s30, %s46
      %p48 = scmp.eq.s32.totalorder %s22, 0
      %p49 = por %p47, %p48
      %s51 = sadd.s32 %s50, 1
      %p54 = scmp.eq.s32.totalorder %s16, 1
      %p55 = scmp.ne.s32.totalorder %s50, %s52
      %p56 = scmp.eq.s32.totalorder %s16, 0
      %p57 = por %p55, %p56
      %p58 = scmp.ne.s32.totalorder %s50, %s52
      %p59 = scmp.eq.s32.totalorder %s21, 1
      %p60 = por %p58, %p59
      %p61 = scmp.ne.s32.totalorder %s52, %s53
      %p62 = scmp.eq.s32.totalorder %s21, 0
      %p63 = por %p61, %p62
      %p64 = scmp.ne.s32.totalorder %s52, %s53
      %p65 = scmp.eq.s32.totalorder %s22, 1
      %p66 = por %p64, %p65
      %p68 = scmp.ne.s32.totalorder %s53, %s67
      %p69 = scmp.eq.s32.totalorder %s22, 0
      %p70 = por %p68, %p69
      %s72 = sadd.s32 %s71, 1
      %p75 = scmp.eq.s32.totalorder %s16, 1
      %p76 = scmp.ne.s32.totalorder %s71, %s73
      %p77 = scmp.eq.s32.totalorder %s16, 0
      %p78 = por %p76, %p77
      %p79 = scmp.ne.s32.totalorder %s71, %s73
      %p80 = scmp.eq.s32.totalorder %s21, 1
      %p81 = por %p79, %p80
      %p82 = scmp.ne.s32.totalorder %s73, %s74
      %p83 = scmp.eq.s32.totalorder %s21, 0
      %p84 = por %p82, %p83
      %p85 = scmp.ne.s32.totalorder %s73, %s74
      %p86 = scmp.eq.s32.totalorder %s22, 1
      %p87 = por %p85, %p86
      %p89 = scmp.ne.s32.totalorder %s74, %s88
      %p90 = scmp.eq.s32.totalorder %s22, 0
      %p91 = por %p89, %p90
      %s93 = sadd.s32 %s92, 1
      %p96 = scmp.eq.s32.totalorder %s16, 1
      %p97 = scmp.ne.s32.totalorder %s92, %s94
      %p98 = scmp.eq.s32.totalorder %s16, 0
      %p99 = por %p97, %p98
      %p100 = scmp.ne.s32.totalorder %s92, %s94
      %p101 = scmp.eq.s32.totalorder %s21, 1
      %p102 = por %p100, %p101
      %p103 = scmp.ne.s32.totalorder %s94, %s95
      %p104 = scmp.eq.s32.totalorder %s21, 0
      %p105 = por %p103, %p104
      %p106 = scmp.ne.s32.totalorder %s94, %s95
      %p107 = scmp.eq.s32.totalorder %s22, 1
      %p108 = por %p106, %p107
      %p110 = scmp.ne.s32.totalorder %s95, %s109
      %p111 = scmp.eq.s32.totalorder %s22, 0
      %p112 = por %p110, %p111
      %s114 = sadd.s32 %s113, 1
      %p117 = scmp.eq.s32.totalorder %s16, 1
      %p118 = scmp.ne.s32.totalorder %s113, %s115
      %p119 = scmp.eq.s32.totalorder %s16, 0
      %p120 = por %p118, %p119
      %p121 = scmp.ne.s32.totalorder %s113, %s115
      %p122 = scmp.eq.s32.totalorder %s21, 1
      %p123 = por %p121, %p122
      %p124 = scmp.ne.s32.totalorder %s115, %s116
      %p125 = scmp.eq.s32.totalorder %s21, 0
      %p126 = por %p124, %p125
      %p127 = scmp.ne.s32.totalorder %s115, %s116
      %p128 = scmp.eq.s32.totalorder %s22, 1
      %p129 = por %p127, %p128
      %p131 = scmp.ne.s32.totalorder %s116, %s130
      %p132 = scmp.eq.s32.totalorder %s22, 0
      %p133 = por %p131, %p132
      %s135 = sadd.s32 %s134, 1
      %p138 = scmp.eq.s32.totalorder %s16, 1
      %p139 = scmp.ne.s32.totalorder %s134, %s136
      %p140 = scmp.eq.s32.totalorder %s16, 0
      %p141 = por %p139, %p140
      %p142 = scmp.ne.s32.totalorder %s134, %s136
      %p143 = scmp.eq.s32.totalorder %s21, 1
      %p144 = por %p142, %p143
      %p145 = scmp.ne.s32.totalorder %s136, %s137
      %p146 = scmp.eq.s32.totalorder %s21, 0
      %p147 = por %p145, %p146
      %p148 = scmp.ne.s32.totalorder %s136, %s137
      %p149 = scmp.eq.s32.totalorder %s22, 1
      %p150 = por %p148, %p149
      %p152 = scmp.ne.s32.totalorder %s137, %s151
      %p153 = scmp.eq.s32.totalorder %s22, 0
      %p154 = por %p152, %p153
      %s156 = sadd.s32 %s155, 1
      %p159 = scmp.eq.s32.totalorder %s16, 1
      %p160 = scmp.ne.s32.totalorder %s155, %s157
      %p161 = scmp.eq.s32.totalorder %s16, 0
      %p162 = por %p160, %p161
      %p163 = scmp.ne.s32.totalorder %s155, %s157
      %p164 = scmp.eq.s32.totalorder %s21, 1
      %p165 = por %p163, %p164
      %p166 = scmp.ne.s32.totalorder %s157, %s158
      %p167 = scmp.eq.s32.totalorder %s21, 0
      %p168 = por %p166, %p167
      %p169 = scmp.ne.s32.totalorder %s157, %s158
      %p170 = scmp.eq.s32.totalorder %s22, 1
      %p171 = por %p169, %p170
      %p173 = scmp.ne.s32.totalorder %s158, %s172
      %p174 = scmp.eq.s32.totalorder %s22, 0
      %p175 = por %p173, %p174
      %s176 = ssub.s32 %s16, %s23
      %p177 = scmp.eq.s32.totalorder %s176, 0
      %s179 = sadd.s32 %s178, 1
      %s180 = scalar_select %p177, %s178, %s179
      %p183 = pneg %p177
      %p184 = scmp.eq.s32.totalorder %s16, 1
      %p185 = por %p183, %p184
      %p186 = scmp.ne.s32.totalorder %s178, %s181
      %p187 = scmp.eq.s32.totalorder %s16, 0
      %p188 = por %p186, %p187
      %p189 = scmp.ne.s32.totalorder %s178, %s181
      %p190 = scmp.eq.s32.totalorder %s21, 1
      %p191 = por %p189, %p190
      %p192 = scmp.ne.s32.totalorder %s181, %s182
      %p193 = scmp.eq.s32.totalorder %s21, 0
      %p194 = por %p192, %p193
      %p195 = scmp.ne.s32.totalorder %s181, %s182
      %p196 = scmp.eq.s32.totalorder %s22, 1
      %p197 = por %p195, %p196
      %p199 = scmp.ne.s32.totalorder %s182, %s198
      %p200 = scmp.eq.s32.totalorder %s22, 0
      %p201 = por %p199, %p200
      %p202 = scmp.le.s32.totalorder 1, %s16
      %p203 = scmp.lt.s32.totalorder %s16, 3
      %p204 = pnand %p202, %p203
      %p205 = pneg %p204
      // Predicated region
      $region9: #{tpu_custom_call.1} parent=5 // pred_check
        _
      $region10: #{tpu_custom_call.1} parent=5 // pred_check_branch
        %207 = sbr.rel (%p204) target = $region12
      $region11: #{tpu_custom_call.1} parent=5 // pred_region
        %s208 = ssub.s32 %s16, 1
        // Predicated region
        $region13: #{tpu_custom_call.1} parent=11 // pred_check
          %p209 = pneg %p63
        $region14: #{tpu_custom_call.1} parent=11 // pred_check_branch
          %211 = sbr.rel (%p209) target = $region16
        $region15: #{tpu_custom_call.1} parent=11 // pred_region
          _
        $region16: #{tpu_custom_call.1} parent=11 // pred_fallthru
          _
        // Predicated region
        $region17: #{tpu_custom_call.1} parent=11 // pred_check
          %p212 = pneg %p84
        $region18: #{tpu_custom_call.1} parent=11 // pred_check_branch
          %214 = sbr.rel (%p212) target = $region20
        $region19: #{tpu_custom_call.1} parent=11 // pred_region
          _
        $region20: #{tpu_custom_call.1} parent=11 // pred_fallthru
          _
        // Predicated region
        $region21: #{tpu_custom_call.1} parent=11 // pred_check
          %p215 = pneg %p105
        $region22: #{tpu_custom_call.1} parent=11 // pred_check_branch
          %217 = sbr.rel (%p215) target = $region24
        $region23: #{tpu_custom_call.1} parent=11 // pred_region
          _
        $region24: #{tpu_custom_call.1} parent=11 // pred_fallthru
          _
        // Predicated region
        $region25: #{tpu_custom_call.1} parent=11 // pred_check
          %p218 = pneg %p126
        $region26: #{tpu_custom_call.1} parent=11 // pred_check_branch
          %220 = sbr.rel (%p218) target = $region28
        $region27: #{tpu_custom_call.1} parent=11 // pred_region
          _
        $region28: #{tpu_custom_call.1} parent=11 // pred_fallthru
          _
        // Predicated region
        $region29: #{tpu_custom_call.1} parent=11 // pred_check
          %p221 = pneg %p147
        $region30: #{tpu_custom_call.1} parent=11 // pred_check_branch
          %223 = sbr.rel (%p221) target = $region32
        $region31: #{tpu_custom_call.1} parent=11 // pred_region
          _
        $region32: #{tpu_custom_call.1} parent=11 // pred_fallthru
          _
        // Predicated region
        $region33: #{tpu_custom_call.1} parent=11 // pred_check
          %p224 = pneg %p168
        $region34: #{tpu_custom_call.1} parent=11 // pred_check_branch
          %226 = sbr.rel (%p224) target = $region36
        $region35: #{tpu_custom_call.1} parent=11 // pred_region
          _
        $region36: #{tpu_custom_call.1} parent=11 // pred_fallthru
          _
      $region12: #{tpu_custom_call.1} parent=5 // pred_fallthru
        _
      %p227 = scmp.lt.s32.totalorder %s16, 2
      // Predicated region
      $region37: #{tpu_custom_call.1} parent=5 // pred_check
        %p228 = pneg %p227
      $region38: #{tpu_custom_call.1} parent=5 // pred_check_branch
        %230 = sbr.rel (%p228) target = $region40
      $region39: #{tpu_custom_call.1} parent=5 // pred_region
        // Predicated region
        $region41: #{tpu_custom_call.1} parent=39 // pred_check
          %p231 = pneg %p36
        $region42: #{tpu_custom_call.1} parent=39 // pred_check_branch
          %233 = sbr.rel (%p231) target = $region44
        $region43: #{tpu_custom_call.1} parent=39 // pred_region
          %p234 = scmp.lt.s32.totalorder %s16, 1
          %s235 = scalar_select %p234, %s16, 1
          %s236 = smul.addr %s235, 2
          %s237 = scalar_lea.vmem %s0, %s236
        $region44: #{tpu_custom_call.1} parent=39 // pred_fallthru
          _
      $region40: #{tpu_custom_call.1} parent=5 // pred_fallthru
        _
      %p238 = scmp.le.s32.totalorder 1, %s16
      %p239 = scmp.lt.s32.totalorder %s16, 3
      %p240 = pnand %p238, %p239
      %p241 = pneg %p240
      // Predicated region
      $region45: #{tpu_custom_call.1} parent=5 // pred_check
        _
      $region46: #{tpu_custom_call.1} parent=5 // pred_check_branch
        %243 = sbr.rel (%p240) target = $region48
      $region47: #{tpu_custom_call.1} parent=5 // pred_region
        %s244 = ssub.s32 %s16, 1
        %p245 = scmp.lt.s32.totalorder %s21, 1
        %s246 = scalar_select %p245, %s21, 1
        %s247 = smul.addr %s246, 2
        %s248 = scalar_lea.vmem %s0, %s247
        %p249 = pneg %p42
        %p250 = pneg %p39
        %p251 = pneg %p63
        %p252 = pneg %p60
        %p253 = pneg %p84
        %p254 = pneg %p81
        %p255 = pneg %p105
        %p256 = pneg %p102
        %p257 = pneg %p126
        %p258 = pneg %p123
        %p259 = pneg %p147
        %p260 = pneg %p144
        %p261 = pneg %p168
        %p262 = pneg %p165
        %p263 = pneg %p194
        %p264 = pneg %p191
        %s265 = sand.u32 %s181, 1
        %s266 = scalar_lea.sflag [#allocation3], %s265
        %s267 = sand.u32 %s181, 1
        %s268 = smul.addr %s267, 2
        %s269 = scalar_lea.vmem [#allocation2], %s268
        %p270 = scmp.lt.s32.totalorder %s21, 1
        %s271 = scalar_select %p270, %s21, 1
        %s272 = smul.addr %s271, 2
        %s273 = scalar_lea.vmem %s0, %s272
        %v274 = vld [vmem:[%s273] sm:$0x3]
        %v275 = vld [vmem:[%s2] sm:$0xff]
        %v276 = vld [vmem:[%s2 + $0x8] sm:$0xff]
        %v277 = vld [vmem:[%s2 + $0x10] sm:$0xff]
        %v278 = vld [vmem:[%s2 + $0x18] sm:$0xff]
        %v279 = vld [vmem:[%s1] sm:$0xff]
        %v280 = vld [vmem:[%s1 + $0x8] sm:$0xff]
        %v281 = vld [vmem:[%s1 + $0x10] sm:$0xff]
        %v282 = vld [vmem:[%s1 + $0x18] sm:$0xff]
        %284 = vset.pattern.permute.xlu0 0
        %285 = vperm.xlu0 %284, %v279
        %v286 = vpop.permute.xlu0 %285
        %289 = vset.pattern.permute.xlu0 0
        %290 = vperm.xlu0 %289, %v280
        %v291 = vpop.permute.xlu0 %290
        %294 = vset.pattern.permute.xlu0 0
        %295 = vperm.xlu0 %294, %v281
        %v296 = vpop.permute.xlu0 %295
        %299 = vset.pattern.permute.xlu0 0
        %300 = vperm.xlu0 %299, %v282
        %v301 = vpop.permute.xlu0 %300
        %v303 = vperm.slane %v274, 0
        %v304 = vmul.f32 %v286, %v303
        %v305 = vmul.f32 %v291, %v303
        %v306 = vmul.f32 %v296, %v303
        %v307 = vmul.f32 %v301, %v303
        %309 = vset.pattern.permute.xlu0 0
        %310 = vperm.xlu0 %309, %v275
        %v311 = vpop.permute.xlu0 %310
        %314 = vset.pattern.permute.xlu0 0
        %315 = vperm.xlu0 %314, %v276
        %v316 = vpop.permute.xlu0 %315
        %319 = vset.pattern.permute.xlu0 0
        %320 = vperm.xlu0 %319, %v277
        %v321 = vpop.permute.xlu0 %320
        %324 = vset.pattern.permute.xlu0 0
        %325 = vperm.xlu0 %324, %v278
        %v326 = vpop.permute.xlu0 %325
        %v328 = vadd.f32 %v311, %v304
        %v329 = vadd.f32 %v316, %v305
        %v330 = vadd.f32 %v321, %v306
        %v331 = vadd.f32 %v326, %v307
        %332 = vset.pattern.permute.xlu0 1
        %333 = vperm.xlu0 %332, %v279
        %v334 = vpop.permute.xlu0 %333
        %336 = vset.pattern.permute.xlu0 1
        %337 = vperm.xlu0 %336, %v280
        %v338 = vpop.permute.xlu0 %337
        %340 = vset.pattern.permute.xlu0 1
        %341 = vperm.xlu0 %340, %v281
        %v342 = vpop.permute.xlu0 %341
        %344 = vset.pattern.permute.xlu0 1
        %345 = vperm.xlu0 %344, %v282
        %v346 = vpop.permute.xlu0 %345
        %v348 = vperm.slane %v274, 1
        %v349 = vmul.f32 %v334, %v348
        %v350 = vmul.f32 %v338, %v348
        %v351 = vmul.f32 %v342, %v348
        %v352 = vmul.f32 %v346, %v348
        %v353 = vadd.f32 %v328, %v349
        %v354 = vadd.f32 %v329, %v350
        %v355 = vadd.f32 %v330, %v351
        %v356 = vadd.f32 %v331, %v352
        %v357 = vtanh.pop %v353
        %v358 = vtanh.pop %v354
        %v359 = vtanh.pop %v355
        %v360 = vtanh.pop %v356
        %v361 = vld [vmem:[%s3] sm:$0xff]
        %v362 = vld [vmem:[%s3 + $0x8] sm:$0xff]
        %v363 = vld [vmem:[%s3 + $0x10] sm:$0xff]
        %v364 = vld [vmem:[%s3 + $0x18] sm:$0xff]
        %v365 = vld [vmem:[%s4] sm:$0xff]
        %v366 = vld [vmem:[%s4 + $0x8] sm:$0xff]
        %v367 = vld [vmem:[%s4 + $0x10] sm:$0xff]
        %v368 = vld [vmem:[%s4 + $0x18] sm:$0xff]
        %370 = vset.pattern.permute.xlu0 0
        %371 = vperm.xlu0 %370, %v365
        %v372 = vpop.permute.xlu0 %371
        %375 = vset.pattern.permute.xlu0 0
        %376 = vperm.xlu0 %375, %v366
        %v377 = vpop.permute.xlu0 %376
        %380 = vset.pattern.permute.xlu0 0
        %381 = vperm.xlu0 %380, %v367
        %v382 = vpop.permute.xlu0 %381
        %385 = vset.pattern.permute.xlu0 0
        %386 = vperm.xlu0 %385, %v368
        %v387 = vpop.permute.xlu0 %386
        %vm389 = vcmask 261120
        %v391 = vsel %vm389, %v361, 0
        %v394 = vsel %vm389, %v362, 0
        %v397 = vsel %vm389, %v363, 0
        %v400 = vsel %vm389, %v364, 0
        %402 = vmatpush.msra.mxu0 0.0
        %403 = vmatpush.msra.mxu0 0.0
        %404 = vmatpush.msra.mxu0 0.0
        %405 = vmatpush.msra.mxu0 0.0
        %406 = vmatpush.msra.mxu0 0.0
        %407 = vmatpush.msra.mxu0 0.0
        %408 = vmatpush.msra.mxu0 0.0
        %409 = vmatpush.msra.mxu0 0.0
        %410 = vmatpush.msra.mxu0 0.0
        %411 = vmatpush.msra.mxu0 0.0
        %412 = vmatpush.msra.mxu0 0.0
        %413 = vmatpush.msra.mxu0 0.0
        %414 = vmatpush.msra.mxu0 %v360
        %415 = vmatpush.msra.mxu0 %v359
        %416 = vmatpush.msra.mxu0 %v358
        %417 = vmatpush.msra.mxu0 %v357
        %418 = vmatmul.f32.gmra.mxu0 %v391
        %v419 = vpop.f32.mrf.mxu0
        %v420 = vadd.f32 %v372, %v419
        %421 = vmatmul.f32.gmra.mxu0 %v394
        %v422 = vpop.f32.mrf.mxu0
        %v423 = vadd.f32 %v377, %v422
        %424 = vmatmul.f32.gmra.mxu0 %v397
        %v425 = vpop.f32.mrf.mxu0
        %v426 = vadd.f32 %v382, %v425
        %427 = vmatmul.f32.gmra.mxu0 %v400
        %v428 = vpop.f32.mrf.mxu0
        %v429 = vadd.f32 %v387, %v428
        %430 = vdwg.mxu0
        %v431 = vtanh.pop %v420
        %v432 = vtanh.pop %v423
        %v433 = vtanh.pop %v426
        %v434 = vtanh.pop %v429
        %v435 = vld [vmem:[%s5] sm:$0x3]
        %v436 = vld [vmem:[%s6] sm:$0x3]
        %438 = vset.pattern.permute.xlu0 0
        %439 = vperm.xlu0 %438, %v436
        %v440 = vpop.permute.xlu0 %439
        %v443 = vsel %vm389, %v435, 0
        %445 = vmatpush.msra.mxu0 0.0
        %446 = vmatpush.msra.mxu0 0.0
        %447 = vmatpush.msra.mxu0 0.0
        %448 = vmatpush.msra.mxu0 0.0
        %449 = vmatpush.msra.mxu0 0.0
        %450 = vmatpush.msra.mxu0 0.0
        %451 = vmatpush.msra.mxu0 0.0
        %452 = vmatpush.msra.mxu0 0.0
        %453 = vmatpush.msra.mxu0 0.0
        %454 = vmatpush.msra.mxu0 0.0
        %455 = vmatpush.msra.mxu0 0.0
        %456 = vmatpush.msra.mxu0 0.0
        %457 = vmatpush.msra.mxu0 %v434
        %458 = vmatpush.msra.mxu0 %v433
        %459 = vmatpush.msra.mxu0 %v432
        %460 = vmatpush.msra.mxu0 %v431
        %461 = vmatmul.f32.gmra.mxu0 %v443
        %v462 = vpop.f32.mrf.mxu0
        %v463 = vadd.f32 %v440, %v462
        %464 = vdwg.mxu0
        %465 = vst [vmem:[%s269] sm:$0x3] %v463
        %s466 = sand.u32 %s181, 1
        %s467 = scalar_lea.sflag [#allocation3], %s466
        %s468 = sand.u32 %s181, 1
        %s469 = smul.addr %s468, 2
        %s470 = scalar_lea.vmem [#allocation2], %s469
        // Predicated region
        $region49: #{tpu_custom_call.1} parent=47 // pred_check
          %p471 = pneg %p191
        $region50: #{tpu_custom_call.1} parent=47 // pred_check_branch
          %473 = sbr.rel (%p471) target = $region52
        $region51: #{tpu_custom_call.1} parent=47 // pred_region
          %475 = vsyncadd %s467, 0
          %s476 = smul.addr %s21, 2
          %s477 = scalar_lea.hbm %s7, %s476
          %s479 = sshll.u32 %s470, 4
          %s480 = int_to_ptr.vmem [resolvable:$true] %s479
          %s481 = sshll.u32 %s477, 4
          %s482 = int_to_ptr.hbm [resolvable:$true] %s481
          %484 = dma.vmem_to_hbm [thread:$0]  %s480, 32, %s482, %s467
        $region52: #{tpu_custom_call.1} parent=47 // pred_fallthru
          _
      $region48: #{tpu_custom_call.1} parent=5 // pred_fallthru
        _
      %p485 = scmp.le.s32.totalorder 2, %s16
      // Predicated region
      $region53: #{tpu_custom_call.1} parent=5 // pred_check
        %p486 = pneg %p485
      $region54: #{tpu_custom_call.1} parent=5 // pred_check_branch
        %488 = sbr.rel (%p486) target = $region56
      $region55: #{tpu_custom_call.1} parent=5 // pred_region
        %s489 = ssub.s32 %s16, 2
        // Predicated region
        $region57: #{tpu_custom_call.1} parent=55 // pred_check
          %p490 = pneg %p197
        $region58: #{tpu_custom_call.1} parent=55 // pred_check_branch
          %492 = sbr.rel (%p490) target = $region60
        $region59: #{tpu_custom_call.1} parent=55 // pred_region
          %s493 = sand.u32 %s182, 1
          %s494 = scalar_lea.sflag [#allocation3], %s493
          %s495 = sand.u32 %s182, 1
          %s496 = smul.addr %s495, 2
          %s497 = scalar_lea.vmem [#allocation2], %s496
          %499 = dma.done %s494, 32
        $region60: #{tpu_custom_call.1} parent=55 // pred_fallthru
          _
      $region56: #{tpu_custom_call.1} parent=5 // pred_fallthru
        _
    $region6: #{tpu_custom_call.1} parent=1 // loop_footer
      %s20 = sadd.s32 1, %s16
    $region7: #{tpu_custom_call.1} parent=1 // loop_footer_branch
      %15 = sbr.rel target = $region3
    $region8: #{tpu_custom_call.1} parent=1 // loop_exit
      _
    %500 = vsyncpa [#allocation3], 1
    %s501 = scalar_lea.sflag [#allocation3], 1
    %502 = vsyncpa %s501, 1

</llo_original>
